<compile_context>
chip_gen: v5e
topology: v5e:2x2
jax: 0.10.0
libtpu: 0.0.40
codegen_flags: <defaults>
</compile_context>

<pallas_src>
import math

import jax
import jax.numpy as jnp
from jax.experimental import pallas as pl
from jax.experimental.pallas import tpu as pltpu

MAX_TIMESTEPS = 50
_PSUM_LANES = 128        # lane-dense slab width for per-tile pooling partial sums


# ----------------------------------------------------------------------------
# Pallas kernel
# ----------------------------------------------------------------------------

def _refine_pool_kernel(x_ref, out_ref, psum_ref):
    """Fused: out = clamp(x, 0, 1); psum = row-sum of x over this lane tile.

    x_ref    : (ROWS, TILE)          input tile
    out_ref  : (ROWS, TILE)          clamped output tile (lane-dense store)
    psum_ref : (ROWS, _PSUM_LANES)   per-tile spatial partial sums, broadcast
                                     across 128 lanes so the store stays unmasked.
    """
    x = x_ref[...]
    out_ref[...] = jnp.clip(x, 0.0, 1.0).astype(out_ref.dtype)
    srow = jnp.sum(x.astype(jnp.float32), axis=1, keepdims=True)       # (ROWS, 1)
    psum_ref[...] = jnp.broadcast_to(srow, psum_ref.shape)


# ----------------------------------------------------------------------------
# Layout / tiling pickers
# ----------------------------------------------------------------------------

def _pick_row_split(bc, hw):
    """Row-split factor R: (bc, hw) -> (bc*R, hw//R) contiguous view.

    Prefer R that makes rows a multiple of 8 (dense sublanes) while keeping the
    lane extent a multiple of 128 (dense lanes, unmasked stores)."""
    fallback = None
    for r in (1, 2, 4, 8):
        if hw % r or (hw // r) % 128:
            continue
        if (bc * r) % 8 == 0:
            return r
        if fallback is None:
            fallback = r            # lane-legal, sublanes padded (still correct)
    return fallback or 1


def _pick_lane_tile(rows, lanes, budget_bytes=8 * 1024 * 1024):
    """Largest 128-multiple tile dividing `lanes` whose double-buffered
    in+out blocks fit the VMEM budget; else the full row (always legal)."""
    for t in (4096, 2048, 1024, 512, 256, 128):
        if lanes % t == 0 and 4 * rows * t * 4 <= budget_bytes:
            return t
    return lanes


# ----------------------------------------------------------------------------
# Fused refine + pool pass
# ----------------------------------------------------------------------------

def refine_and_pool(xf):
    """xf: (B*C, H*W) float32 -> (clamp(xf, 0, 1), per-(b,c) spatial sums)."""
    bc, hw = xf.shape
    r = _pick_row_split(bc, hw)
    rows, lanes = bc * r, hw // r
    xr = xf.reshape(rows, lanes)           # contiguous view: no transpose, no copy

    tile = _pick_lane_tile(rows, lanes)
    n_tiles = lanes // tile

    refined, psums = pl.pallas_call(
        _refine_pool_kernel,
        out_shape=(
            jax.ShapeDtypeStruct((rows, lanes), xf.dtype),
            jax.ShapeDtypeStruct((rows, n_tiles * _PSUM_LANES), jnp.float32),
        ),
        grid=(n_tiles,),
        in_specs=[pl.BlockSpec((rows, tile), lambda j: (0, j))],
        out_specs=(
            pl.BlockSpec((rows, tile), lambda j: (0, j)),
            pl.BlockSpec((rows, _PSUM_LANES), lambda j: (0, j)),
        ),
        compiler_params=pltpu.CompilerParams(
            dimension_semantics=("parallel",),        # megacore-shardable on v7x
            vmem_limit_bytes=32 * 1024 * 1024,        # explicit; fits v7x scoped VMEM
        ),
    )(xr)

    # Tiny host-side reduction over the per-tile partial sums (lane 0 per slab),
    # then fold the R split rows back into their (b, c) row.
    row_sums = psums.reshape(rows, n_tiles, _PSUM_LANES)[:, :, 0].sum(axis=1)
    row_sums = row_sums.reshape(bc, r).sum(axis=1)                     # (B*C,)
    return refined.reshape(bc, hw), row_sums


# ----------------------------------------------------------------------------
# Module forward
# ----------------------------------------------------------------------------

def diffusion_refinement(x, params):
    """Forward pass of DiffusionRefinement. Returns (refined, timesteps)."""
    B, C, H, W = x.shape
    xf = x.reshape(B * C, H * W)         # contiguous view: no transpose, no copy
    refined_flat, row_sums = refine_and_pool(xf)
    refined = refined_flat.reshape(B, C, H, W)

    # timestep_predictor: AdaptiveAvgPool2d(1) -> Conv2d(3,1,1x1) -> Flatten -> Sigmoid
    pooled = (row_sums * (1.0 / float(H * W))).reshape(B, C)                   # (B, 3)
    t_weight = jax.nn.sigmoid(pooled @ params['tpred_w'] + params['tpred_b'])  # (B, 1)
    # torch .long() is int64; JAX default int32 (x64 disabled) — range is <= 50.
    timesteps = jnp.clip(
        (t_weight.reshape(-1) * MAX_TIMESTEPS).astype(jnp.int32), 1, MAX_TIMESTEPS)

    # TODO(synk): SDXL UNet noise_pred unavailable -> treated as zero; the
    # clamp(x + noise_pred, 0, 1) therefore reduces to the fused clamp above.
    return refined, timesteps


def init_params(key):
    # nn.Conv2d(3, 1, kernel_size=1): weight (1,3,1,1) stored matmul-ready (3,1).
    kw, _ = jax.random.split(key)
    bound = 1.0 / math.sqrt(3.0)
    w = jax.random.uniform(kw, (3, 1), jnp.float32, minval=-bound, maxval=bound)
    b = jnp.zeros((1,), jnp.float32)
    return {'tpred_w': w, 'tpred_b': b}


# ----------------------------------------------------------------------------
# Main
# ----------------------------------------------------------------------------

if __name__ == "__main__":
    key = jax.random.PRNGKey(0)
    pkey, xkey = jax.random.split(key)
    params = init_params(pkey)

    B, C, H, W = 2, 3, 64, 64            # bc=6 -> row-split R=4 -> 24x1024 slab
    # Input range straddles [0, 1] so the clamp is exercised on both sides.
    x = jax.random.uniform(xkey, (B, C, H, W), jnp.float32,
                           minval=-0.25, maxval=1.25)

    refined, timesteps = jax.jit(diffusion_refinement)(x, params)
    refined, timesteps = jax.block_until_ready((refined, timesteps))

    # Correctness vs. a pure-JAX reference of the implemented semantics.
    assert refined.shape == (B, C, H, W), refined.shape
    assert bool(jnp.all(jnp.isfinite(refined)))
    assert bool(jnp.allclose(refined, jnp.clip(x, 0.0, 1.0)))
    assert float(refined.min()) >= 0.0 and float(refined.max()) <= 1.0

    pooled_ref = jnp.mean(x, axis=(2, 3))                               # (B, 3)
    tw_ref = jax.nn.sigmoid(pooled_ref @ params['tpred_w'] + params['tpred_b'])
    ts_ref = jnp.clip((tw_ref.reshape(-1) * MAX_TIMESTEPS).astype(jnp.int32),
                      1, MAX_TIMESTEPS)
    assert timesteps.shape == (B,)
    assert timesteps.dtype == jnp.int32
    assert bool(jnp.all((timesteps >= 1) & (timesteps <= MAX_TIMESTEPS)))
    assert bool(jnp.all(timesteps == ts_ref)), (timesteps, ts_ref)

    print("KERNEL_OK")
</pallas_src>

<mosaic_0001>
module attributes {stable_mosaic.version = 11 : i64} {
  func.func @_refine_pool_kernel(%arg0: i32, %arg1: memref<24x1024xf32, #tpu.memory_space<vmem>>, %arg2: memref<24x1024xf32, #tpu.memory_space<vmem>>, %arg3: memref<24x128xf32, #tpu.memory_space<vmem>>) attributes {dimension_semantics = [#tpu.dimension_semantics<parallel>], iteration_bounds = array<i64: 1>, scalar_prefetch = 0 : i64, scratch_operands = 0 : i64, tpu.core_type = #tpu.core_type<tc>, window_params = [{transform_indices = @transform_0, window_bounds = array<i64: 24, 1024>}, {transform_indices = @transform_1, window_bounds = array<i64: 24, 1024>}, {transform_indices = @transform_2, window_bounds = array<i64: 24, 128>}]} {
    %c0 = arith.constant 0 : index
    %c0_0 = arith.constant 0 : index
    %0 = vector.load %arg1[%c0, %c0_0] : memref<24x1024xf32, #tpu.memory_space<vmem>>, vector<24x1024xf32>
    %cst = arith.constant 0.000000e+00 : f32
    %cst_1 = arith.constant 1.000000e+00 : f32
    %1 = vector.broadcast %cst : f32 to vector<24x1024xf32>
    %2 = arith.maximumf %1, %0 : vector<24x1024xf32>
    %3 = vector.broadcast %cst_1 : f32 to vector<24x1024xf32>
    %4 = arith.minimumf %3, %2 : vector<24x1024xf32>
    %c0_2 = arith.constant 0 : index
    %c0_3 = arith.constant 0 : index
    %5 = vector.load %arg2[%c0_2, %c0_3] : memref<24x1024xf32, #tpu.memory_space<vmem>>, vector<24x1024xf32>
    tpu.vector_store %arg2[%c0_2, %c0_3], %4 {strides = array<i32>} : memref<24x1024xf32, #tpu.memory_space<vmem>>, vector<24x1024xf32>,
    %cst_4 = arith.constant dense<0.000000e+00> : vector<24xf32>
    %6 = vector.multi_reduction <add>, %0, %cst_4 [1] : vector<24x1024xf32> to vector<24xf32>
    %7 = vector.shape_cast %6 : vector<24xf32> to vector<24x1xf32>
    %8 = vector.shape_cast %7 : vector<24x1xf32> to vector<24x1xf32>
    %9 = vector.broadcast %8 : vector<24x1xf32> to vector<24x128xf32>
    %c0_5 = arith.constant 0 : index
    %c0_6 = arith.constant 0 : index
    %10 = vector.load %arg3[%c0_5, %c0_6] : memref<24x128xf32, #tpu.memory_space<vmem>>, vector<24x128xf32>
    tpu.vector_store %arg3[%c0_5, %c0_6], %9 {strides = array<i32>} : memref<24x128xf32, #tpu.memory_space<vmem>>, vector<24x128xf32>,
    return
  }
  func.func @transform_0(%arg0: i32) -> (i32, i32) {
    %c0_i32 = arith.constant 0 : i32
    %c0_i32_0 = arith.constant 0 : i32
    return %c0_i32, %arg0 : i32, i32
  }
  func.func @transform_1(%arg0: i32) -> (i32, i32) {
    %c0_i32 = arith.constant 0 : i32
    %c0_i32_0 = arith.constant 0 : i32
    return %c0_i32, %arg0 : i32, i32
  }
  func.func @transform_2(%arg0: i32) -> (i32, i32) {
    %c0_i32 = arith.constant 0 : i32
    %c0_i32_0 = arith.constant 0 : i32
    return %c0_i32, %arg0 : i32, i32
  }
}

</mosaic_0001>

<llo_original>
// kernel: diffusion_refinement.1
$region0: #{diffusion_refinement.1}
  #allocation0 [shape = 'u32[]', space=smem, size = 0x4, offset = 0x4, fixed_abs, tag = 'smem constant byte address 0x4 - core index']
  #allocation1 [shape = 'u32[72,128]{1,0:T(1,128)}', space=vmem, size = 0x9000, scoped, tag = 'internal scratch']
  %s0 = inlined_call_operand.vmem [shape: f32[24,1024], index: 0, kind: input, shape index: {}]
  %s1 = inlined_call_operand.vmem [shape: f32[24,1024], index: 1, kind: output, shape index: {0}]
  %s2 = inlined_call_operand.vmem [shape: f32[24,128], index: 2, kind: output, shape index: {1}]
  %3 = xla_tuple %s1, %s2
  %s4 = sld [smem:[#allocation0]]
  $region22: #{diffusion_refinement.1} parent=0
    _
  %s6 = ssub.s32 1, %s4
  %s7 = scalar_select 0, %s6, %s4
  // Predicated region
  $region2: #{diffusion_refinement.1} parent=0 // pred_check
    _
  $region3: #{diffusion_refinement.1} parent=0 // pred_check_branch
    %9 = sbr.rel (0) target = $region5
  $region4: #{diffusion_refinement.1} parent=0 // pred_region
    _
  $region5: #{diffusion_refinement.1} parent=0 // pred_fallthru
    _
  %v10 = vld [vmem:[%s0] sm:$0xff]
  %v11 = vld [vmem:[%s0 + $0x8] sm:$0xff]
  %v12 = vld [vmem:[%s0 + $0x10] sm:$0xff]
  %v13 = vld [vmem:[%s0 + $0x18] sm:$0xff]
  %v14 = vld [vmem:[%s0 + $0x20] sm:$0xff]
  %v15 = vld [vmem:[%s0 + $0x28] sm:$0xff]
  %v16 = vld [vmem:[%s0 + $0x30] sm:$0xff]
  %v17 = vld [vmem:[%s0 + $0x38] sm:$0xff]
  %v18 = vld [vmem:[%s0 + $0x40] sm:$0xff]
  %v19 = vld [vmem:[%s0 + $0x48] sm:$0xff]
  %v20 = vld [vmem:[%s0 + $0x50] sm:$0xff]
  %v21 = vld [vmem:[%s0 + $0x58] sm:$0xff]
  %v22 = vld [vmem:[%s0 + $0x60] sm:$0xff]
  %v23 = vld [vmem:[%s0 + $0x68] sm:$0xff]
  %v24 = vld [vmem:[%s0 + $0x70] sm:$0xff]
  %v25 = vld [vmem:[%s0 + $0x78] sm:$0xff]
  %v26 = vld [vmem:[%s0 + $0x80] sm:$0xff]
  %v27 = vld [vmem:[%s0 + $0x88] sm:$0xff]
  %v28 = vld [vmem:[%s0 + $0x90] sm:$0xff]
  %v29 = vld [vmem:[%s0 + $0x98] sm:$0xff]
  %v30 = vld [vmem:[%s0 + $0xa0] sm:$0xff]
  %v31 = vld [vmem:[%s0 + $0xa8] sm:$0xff]
  %v32 = vld [vmem:[%s0 + $0xb0] sm:$0xff]
  %v33 = vld [vmem:[%s0 + $0xb8] sm:$0xff]
  %v34 = vmax.f32 %v10, 0.0
  %v35 = vmax.f32 %v11, 0.0
  %v36 = vmax.f32 %v12, 0.0
  %v37 = vmax.f32 %v13, 0.0
  %v38 = vmax.f32 %v14, 0.0
  %v39 = vmax.f32 %v15, 0.0
  %v40 = vmax.f32 %v16, 0.0
  %v41 = vmax.f32 %v17, 0.0
  %v42 = vmax.f32 %v18, 0.0
  %v43 = vmax.f32 %v19, 0.0
  %v44 = vmax.f32 %v20, 0.0
  %v45 = vmax.f32 %v21, 0.0
  %v46 = vmax.f32 %v22, 0.0
  %v47 = vmax.f32 %v23, 0.0
  %v48 = vmax.f32 %v24, 0.0
  %v49 = vmax.f32 %v25, 0.0
  %v50 = vmax.f32 %v26, 0.0
  %v51 = vmax.f32 %v27, 0.0
  %v52 = vmax.f32 %v28, 0.0
  %v53 = vmax.f32 %v29, 0.0
  %v54 = vmax.f32 %v30, 0.0
  %v55 = vmax.f32 %v31, 0.0
  %v56 = vmax.f32 %v32, 0.0
  %v57 = vmax.f32 %v33, 0.0
  %v58 = vmin.f32 %v34, 1.0
  %v59 = vmin.f32 %v35, 1.0
  %v60 = vmin.f32 %v36, 1.0
  %v61 = vmin.f32 %v37, 1.0
  %v62 = vmin.f32 %v38, 1.0
  %v63 = vmin.f32 %v39, 1.0
  %v64 = vmin.f32 %v40, 1.0
  %v65 = vmin.f32 %v41, 1.0
  %v66 = vmin.f32 %v42, 1.0
  %v67 = vmin.f32 %v43, 1.0
  %v68 = vmin.f32 %v44, 1.0
  %v69 = vmin.f32 %v45, 1.0
  %v70 = vmin.f32 %v46, 1.0
  %v71 = vmin.f32 %v47, 1.0
  %v72 = vmin.f32 %v48, 1.0
  %v73 = vmin.f32 %v49, 1.0
  %v74 = vmin.f32 %v50, 1.0
  %v75 = vmin.f32 %v51, 1.0
  %v76 = vmin.f32 %v52, 1.0
  %v77 = vmin.f32 %v53, 1.0
  %v78 = vmin.f32 %v54, 1.0
  %v79 = vmin.f32 %v55, 1.0
  %v80 = vmin.f32 %v56, 1.0
  %v81 = vmin.f32 %v57, 1.0
  %82 = vst [vmem:[%s1] sm:$0xff] %v58
  %83 = vst [vmem:[%s1 + $0x8] sm:$0xff] %v59
  %84 = vst [vmem:[%s1 + $0x10] sm:$0xff] %v60
  %85 = vst [vmem:[%s1 + $0x18] sm:$0xff] %v61
  %86 = vst [vmem:[%s1 + $0x20] sm:$0xff] %v62
  %87 = vst [vmem:[%s1 + $0x28] sm:$0xff] %v63
  %88 = vst [vmem:[%s1 + $0x30] sm:$0xff] %v64
  %89 = vst [vmem:[%s1 + $0x38] sm:$0xff] %v65
  %90 = vst [vmem:[%s1 + $0x40] sm:$0xff] %v66
  %91 = vst [vmem:[%s1 + $0x48] sm:$0xff] %v67
  %92 = vst [vmem:[%s1 + $0x50] sm:$0xff] %v68
  %93 = vst [vmem:[%s1 + $0x58] sm:$0xff] %v69
  %94 = vst [vmem:[%s1 + $0x60] sm:$0xff] %v70
  %95 = vst [vmem:[%s1 + $0x68] sm:$0xff] %v71
  %96 = vst [vmem:[%s1 + $0x70] sm:$0xff] %v72
  %97 = vst [vmem:[%s1 + $0x78] sm:$0xff] %v73
  %98 = vst [vmem:[%s1 + $0x80] sm:$0xff] %v74
  %99 = vst [vmem:[%s1 + $0x88] sm:$0xff] %v75
  %100 = vst [vmem:[%s1 + $0x90] sm:$0xff] %v76
  %101 = vst [vmem:[%s1 + $0x98] sm:$0xff] %v77
  %102 = vst [vmem:[%s1 + $0xa0] sm:$0xff] %v78
  %103 = vst [vmem:[%s1 + $0xa8] sm:$0xff] %v79
  %104 = vst [vmem:[%s1 + $0xb0] sm:$0xff] %v80
  %105 = vst [vmem:[%s1 + $0xb8] sm:$0xff] %v81
  %v106 = vadd.f32 %v10, %v11
  %v107 = vadd.f32 %v106, %v12
  %v108 = vadd.f32 %v107, %v13
  %v109 = vadd.f32 %v108, %v14
  %v110 = vadd.f32 %v109, %v15
  %v111 = vadd.f32 %v110, %v16
  %v112 = vadd.f32 %v111, %v17
  %113 = vadd.xlane.f32.xlu0 %v112
  %v114 = vpop.xlane.xlu0 %113
  %v115 = vadd.f32 %v18, %v19
  %v116 = vadd.f32 %v115, %v20
  %v117 = vadd.f32 %v116, %v21
  %v118 = vadd.f32 %v117, %v22
  %v119 = vadd.f32 %v118, %v23
  %v120 = vadd.f32 %v119, %v24
  %v121 = vadd.f32 %v120, %v25
  %122 = vadd.xlane.f32.xlu0 %v121
  %v123 = vpop.xlane.xlu0 %122
  %v124 = vadd.f32 %v26, %v27
  %v125 = vadd.f32 %v124, %v28
  %v126 = vadd.f32 %v125, %v29
  %v127 = vadd.f32 %v126, %v30
  %v128 = vadd.f32 %v127, %v31
  %v129 = vadd.f32 %v128, %v32
  %v130 = vadd.f32 %v129, %v33
  %131 = vadd.xlane.f32.xlu0 %v130
  %v132 = vpop.xlane.xlu0 %131
  %133 = vst [vmem:[%s2] sm:$0xff] %v114
  %134 = vst [vmem:[%s2 + $0x8] sm:$0xff] %v123
  %135 = vst [vmem:[%s2 + $0x10] sm:$0xff] %v132
  // Predicated region
  $region6: #{diffusion_refinement.1} parent=0 // pred_check
    _
  $region7: #{diffusion_refinement.1} parent=0 // pred_check_branch
    %137 = sbr.rel (0) target = $region9
  $region8: #{diffusion_refinement.1} parent=0 // pred_region
    _
  $region9: #{diffusion_refinement.1} parent=0 // pred_fallthru
    _
  // Predicated region
  $region10: #{diffusion_refinement.1} parent=0 // pred_check
    _
  $region11: #{diffusion_refinement.1} parent=0 // pred_check_branch
    %139 = sbr.rel (0) target = $region13
  $region12: #{diffusion_refinement.1} parent=0 // pred_region
    _
  $region13: #{diffusion_refinement.1} parent=0 // pred_fallthru
    _
  // Predicated region
  $region14: #{diffusion_refinement.1} parent=0 // pred_check
    _
  $region15: #{diffusion_refinement.1} parent=0 // pred_check_branch
    %141 = sbr.rel (0) target = $region17
  $region16: #{diffusion_refinement.1} parent=0 // pred_region
    _
  $region17: #{diffusion_refinement.1} parent=0 // pred_fallthru
    _
  // Predicated region
  $region18: #{diffusion_refinement.1} parent=0 // pred_check
    _
  $region19: #{diffusion_refinement.1} parent=0 // pred_check_branch
    %143 = sbr.rel (0) target = $region21
  $region20: #{diffusion_refinement.1} parent=0 // pred_region
    _
  $region21: #{diffusion_refinement.1} parent=0 // pred_fallthru
    _

</llo_original>
